<compile_context>
chip_gen: v5e
topology: v5e:2x2
jax: 0.10.0
libtpu: 0.0.40
codegen_flags: <defaults>
</compile_context>

<pallas_src>
import functools

import jax
import jax.numpy as jnp
from jax import lax
from jax.experimental import pallas as pl
from jax.experimental.pallas import tpu as pltpu


def _round_up(a, b):
    return (a + b - 1) // b * b


def _alignment_loss_kernel(x_ref, out_ref, *, gamma, d, valid_m, tile_m):
    """x_ref: (tile_m, 4*d) fused [l | r | fl | fr] rows; out_ref: (tile_m, 1)."""
    tile_idx = pl.program_id(0)

    x = x_ref[...].astype(jnp.float32)
    l = x[:, 0 * d:1 * d]
    r = x[:, 1 * d:2 * d]
    fl = x[:, 2 * d:3 * d]
    fr = x[:, 3 * d:4 * d]

    # L1 norms along the feature (lane) axis, keepdim -> (tile_m, 1)
    l1_dist = jnp.sum(jnp.abs(l - r), axis=-1, keepdims=True)
    d_l_fr = jnp.sum(jnp.abs(l - fr), axis=-1, keepdims=True)
    d_fl_r = jnp.sum(jnp.abs(fl - r), axis=-1, keepdims=True)

    loss = (jnp.maximum(gamma + l1_dist - d_l_fr, 0.0)
            + jnp.maximum(gamma + l1_dist - d_fl_r, 0.0))

    # Mask rows past the true M (padding rows would otherwise add 2*gamma each).
    row = tile_idx * tile_m + lax.broadcasted_iota(jnp.int32, (tile_m, 1), 0)
    out_ref[...] = jnp.where(row < valid_m, loss, 0.0)


def alignment_loss(outfeature, trainset, *, gamma, tile_m=1024):
    """outfeature: (N, D) float, trainset: (M, 4) int indices -> (1, 1) f32 loss."""
    h = jnp.asarray(outfeature)
    idx = jnp.asarray(trainset, dtype=jnp.int32)
    M = idx.shape[0]
    D = h.shape[-1]

    # Glue: one fused gather -> (M, 4*D), lane-dense single input stream.
    x = jnp.take(h, idx.reshape(-1), axis=0).reshape(M, 4 * D)

    # Tile-size selection: as large as possible while keeping the double-
    # buffered input comfortably inside every generation's default scoped VMEM
    # (v5e 16 MiB, v6e/v7x 32 MiB scoped; v7x only 64 MiB physical).
    vmem_budget_bytes = 8 * 1024 * 1024
    bytes_per_row = 4 * D * x.dtype.itemsize
    cap = max(8, (vmem_budget_bytes // (2 * bytes_per_row)) // 8 * 8)
    tm = min(int(tile_m), cap, _round_up(M, 8))
    tm = max(8, (tm // 8) * 8)

    num_tiles = pl.cdiv(M, tm)
    padded_m = num_tiles * tm
    if padded_m != M:
        x = jnp.pad(x, ((0, padded_m - M), (0, 0)))

    kernel = functools.partial(
        _alignment_loss_kernel, gamma=float(gamma), d=D, valid_m=M, tile_m=tm)

    per_row = pl.pallas_call(
        kernel,
        out_shape=jax.ShapeDtypeStruct((padded_m, 1), jnp.float32),
        grid_spec=pltpu.PrefetchScalarGridSpec(
            num_scalar_prefetch=0,
            grid=(num_tiles,),
            in_specs=[pl.BlockSpec((tm, 4 * D), lambda i: (i, 0))],
            out_specs=pl.BlockSpec((tm, 1), lambda i: (i, 0)),
        ),
        compiler_params=pltpu.CompilerParams(
            # Every grid step is independent -> shardable across v7x's 2 TCs.
            dimension_semantics=("parallel",),
        ),
    )(x)

    # Cheap final reduction over M rows (keepdim -> (1, 1)), kept in float32.
    return jnp.sum(per_row, axis=0, keepdims=True)


def _reference(outfeature, trainset, gamma):
    h = jnp.asarray(outfeature, dtype=jnp.float32)
    idx = jnp.asarray(trainset, dtype=jnp.int32)
    l, r, fl, fr = (h[idx[:, 0]], h[idx[:, 1]], h[idx[:, 2]], h[idx[:, 3]])
    l1 = jnp.sum(jnp.abs(l - r), axis=-1, keepdims=True)
    loss = (jnp.maximum(gamma + l1 - jnp.sum(jnp.abs(l - fr), -1, keepdims=True), 0.0)
            + jnp.maximum(gamma + l1 - jnp.sum(jnp.abs(fl - r), -1, keepdims=True), 0.0))
    return jnp.sum(loss, axis=0, keepdims=True)


if __name__ == "__main__":
    key = jax.random.PRNGKey(0)
    k_feat, k_idx = jax.random.split(key)

    N, D = 16, 32      # embedding table: 16 nodes, hidden=32
    gamma = 0.5
    outfeature = jax.random.normal(k_feat, (N, D), dtype=jnp.float32)

    # Case 1: M multiple of 8, single fused lane-dense tile (4*D = 128 lanes).
    M1 = 16
    trainset1 = jax.random.randint(k_idx, (M1, 4), 0, N, dtype=jnp.int32)
    out1 = jax.block_until_ready(alignment_loss(outfeature, trainset1, gamma=gamma))
    ref1 = _reference(outfeature, trainset1, gamma)
    assert out1.shape == (1, 1)
    assert jnp.allclose(out1, ref1, rtol=1e-5, atol=1e-5), (out1, ref1)

    # Case 2: ragged M + multi-tile grid (exercises in-kernel remainder mask).
    M2 = 20
    k_idx2 = jax.random.fold_in(k_idx, 1)
    trainset2 = jax.random.randint(k_idx2, (M2, 4), 0, N, dtype=jnp.int32)
    out2 = jax.block_until_ready(
        alignment_loss(outfeature, trainset2, gamma=gamma, tile_m=8))
    ref2 = _reference(outfeature, trainset2, gamma)
    assert out2.shape == (1, 1)
    assert jnp.allclose(out2, ref2, rtol=1e-5, atol=1e-5), (out2, ref2)

    print("KERNEL_OK")
</pallas_src>

<mosaic_0001>
module attributes {stable_mosaic.version = 11 : i64} {
  func.func @_alignment_loss_kernel(%arg0: i32, %arg1: memref<16x128xf32, #tpu.memory_space<vmem>>, %arg2: memref<16x1xf32, #tpu.memory_space<vmem>>) attributes {dimension_semantics = [#tpu.dimension_semantics<parallel>], iteration_bounds = array<i64: 1>, scalar_prefetch = 0 : i64, scratch_operands = 0 : i64, tpu.core_type = #tpu.core_type<tc>, window_params = [{transform_indices = @transform_0, window_bounds = array<i64: 16, 128>}, {transform_indices = @transform_1, window_bounds = array<i64: 16, 1>}]} {
    %c0 = arith.constant 0 : index
    %c0_0 = arith.constant 0 : index
    %0 = vector.load %arg1[%c0, %c0_0] : memref<16x128xf32, #tpu.memory_space<vmem>>, vector<16x128xf32>
    %1 = vector.extract_strided_slice %0 {offsets = [0, 0], sizes = [16, 32], strides = [1, 1]} : vector<16x128xf32> to vector<16x32xf32>
    %2 = vector.extract_strided_slice %0 {offsets = [0, 32], sizes = [16, 32], strides = [1, 1]} : vector<16x128xf32> to vector<16x32xf32>
    %3 = vector.extract_strided_slice %0 {offsets = [0, 64], sizes = [16, 32], strides = [1, 1]} : vector<16x128xf32> to vector<16x32xf32>
    %4 = vector.extract_strided_slice %0 {offsets = [0, 96], sizes = [16, 32], strides = [1, 1]} : vector<16x128xf32> to vector<16x32xf32>
    %5 = arith.subf %1, %2 : vector<16x32xf32>
    %6 = math.absf %5 : vector<16x32xf32>
    %cst = arith.constant dense<0.000000e+00> : vector<16xf32>
    %7 = vector.multi_reduction <add>, %6, %cst [1] : vector<16x32xf32> to vector<16xf32>
    %8 = vector.shape_cast %7 : vector<16xf32> to vector<16x1xf32>
    %9 = arith.subf %1, %4 : vector<16x32xf32>
    %10 = math.absf %9 : vector<16x32xf32>
    %cst_1 = arith.constant dense<0.000000e+00> : vector<16xf32>
    %11 = vector.multi_reduction <add>, %10, %cst_1 [1] : vector<16x32xf32> to vector<16xf32>
    %12 = vector.shape_cast %11 : vector<16xf32> to vector<16x1xf32>
    %13 = arith.subf %3, %2 : vector<16x32xf32>
    %14 = math.absf %13 : vector<16x32xf32>
    %cst_2 = arith.constant dense<0.000000e+00> : vector<16xf32>
    %15 = vector.multi_reduction <add>, %14, %cst_2 [1] : vector<16x32xf32> to vector<16xf32>
    %16 = vector.shape_cast %15 : vector<16xf32> to vector<16x1xf32>
    %cst_3 = arith.constant 5.000000e-01 : f32
    %17 = vector.broadcast %cst_3 : f32 to vector<16x1xf32>
    %18 = arith.addf %17, %8 : vector<16x1xf32>
    %19 = arith.subf %18, %12 : vector<16x1xf32>
    %cst_4 = arith.constant 0.000000e+00 : f32
    %20 = vector.broadcast %cst_4 : f32 to vector<16x1xf32>
    %21 = arith.maximumf %19, %20 : vector<16x1xf32>
    %cst_5 = arith.constant 5.000000e-01 : f32
    %22 = vector.broadcast %cst_5 : f32 to vector<16x1xf32>
    %23 = arith.addf %22, %8 : vector<16x1xf32>
    %24 = arith.subf %23, %16 : vector<16x1xf32>
    %cst_6 = arith.constant 0.000000e+00 : f32
    %25 = vector.broadcast %cst_6 : f32 to vector<16x1xf32>
    %26 = arith.maximumf %24, %25 : vector<16x1xf32>
    %27 = arith.addf %21, %26 : vector<16x1xf32>
    %c16_i32 = arith.constant 16 : i32
    %28 = arith.muli %arg0, %c16_i32 : i32
    %29 = tpu.iota {dimensions = array<i32: 0>} : vector<16x1xi32>
    %30 = vector.broadcast %28 : i32 to vector<16x1xi32>
    %31 = arith.addi %30, %29 : vector<16x1xi32>
    %c16_i32_7 = arith.constant 16 : i32
    %32 = vector.broadcast %c16_i32_7 : i32 to vector<16x1xi32>
    %33 = arith.cmpi slt, %31, %32 : vector<16x1xi32>
    %cst_8 = arith.constant 0.000000e+00 : f32
    %34 = vector.broadcast %cst_8 : f32 to vector<16x1xf32>
    %35 = arith.select %33, %27, %34 : vector<16x1xi1>, vector<16x1xf32>
    %c0_9 = arith.constant 0 : index
    %c0_10 = arith.constant 0 : index
    %36 = vector.load %arg2[%c0_9, %c0_10] : memref<16x1xf32, #tpu.memory_space<vmem>>, vector<16x1xf32>
    tpu.vector_store %arg2[%c0_9, %c0_10], %35 {strides = array<i32>} : memref<16x1xf32, #tpu.memory_space<vmem>>, vector<16x1xf32>,
    return
  }
  func.func @transform_0(%arg0: i32) -> (i32, i32) {
    %c0_i32 = arith.constant 0 : i32
    %c0_i32_0 = arith.constant 0 : i32
    return %arg0, %c0_i32 : i32, i32
  }
  func.func @transform_1(%arg0: i32) -> (i32, i32) {
    %c0_i32 = arith.constant 0 : i32
    %c0_i32_0 = arith.constant 0 : i32
    return %arg0, %c0_i32 : i32, i32
  }
}

</mosaic_0001>

<llo_original>
// kernel: tpu_custom_call.1
$region0: #{tpu_custom_call.1}
  #allocation0 [shape = 'u32[]', space=smem, size = 0x4, offset = 0x4, fixed_abs, tag = 'smem constant byte address 0x4 - core index']
  #allocation1 [shape = 'u32[72,128]{1,0:T(1,128)}', space=vmem, size = 0x9000, scoped, tag = 'internal scratch']
  %s0 = inlined_call_operand.hbm [shape: f32[16,128], index: 0, kind: input, shape index: {}]
  %s1 = inlined_call_operand.vmem [shape: f32[16,1], index: 1, kind: output, shape index: {}]
  %s2 = sld [smem:[#allocation0]]
  $region18: #{tpu_custom_call.1} parent=0
    _
  %s4 = ssub.s32 1, %s2
  %s5 = scalar_select 0, %s4, %s2
  $region1: #{tpu_custom_call.1} parent=0
    #allocation2 [shape = 'u8[8192]{0}', space=vmem, size = 0x2000, scoped, tag = 'input window, operand 0, single buffered']
    #allocation3 [shape = 's32[1]{0}', space=sflag, size = 0x4, scoped, tag = 'scoped memory for tpu_custom_call.1']
    %6 = vsyncpa [#allocation3], 0
    // Predicated region
    $region2: #{tpu_custom_call.1} parent=1 // pred_check
      _
    $region3: #{tpu_custom_call.1} parent=1 // pred_check_branch
      %8 = sbr.rel (0) target = $region5
    $region4: #{tpu_custom_call.1} parent=1 // pred_region
      %10 = vsyncadd [#allocation3], 0
      %s11 = sshll.u32 %s0, 4
      %s12 = int_to_ptr.hbm [resolvable:$true] %s11
      %s13 = sshll.u32 [#allocation2], 4
      %s14 = int_to_ptr.vmem [resolvable:$true] %s13
      %19 = dma.hbm_to_vmem [thread:$0]  %s12, 256, %s14, [#allocation3], 128, 128, 8
    $region5: #{tpu_custom_call.1} parent=1 // pred_fallthru
      _
    // Predicated region
    $region6: #{tpu_custom_call.1} parent=1 // pred_check
      _
    $region7: #{tpu_custom_call.1} parent=1 // pred_check_branch
      %21 = sbr.rel (0) target = $region9
    $region8: #{tpu_custom_call.1} parent=1 // pred_region
      %23 = dma.done [#allocation3], 256
    $region9: #{tpu_custom_call.1} parent=1 // pred_fallthru
      _
    %v24 = vld [vmem:[#allocation2] sm:$0xff]
    %v25 = vld [vmem:[#allocation2 + $0x8] sm:$0xff]
    %28 = vrot.lane.b32.xlu0 %v24, 96
    %v29 = vpop.permute.xlu0 %28
    %30 = vrot.lane.b32.xlu0 %v25, 96
    %v31 = vpop.permute.xlu0 %30
    %v34 = vsub.f32 %v24, %v29
    %v35 = vsub.f32 %v25, %v31
    %v36 = vand.u32 2147483647, %v34
    %v37 = vand.u32 2147483647, %v35
    %vm38 = vcmask 261120
    %v39 = vsel %vm38, %v36, 0.0
    %40 = vadd.xlane.f32.xlu0 %v39
    %v41 = vpop.xlane.xlu0 %40
    %v42 = vsel %vm38, %v37, 0.0
    %43 = vadd.xlane.f32.xlu0 %v42
    %v44 = vpop.xlane.xlu0 %43
    %45 = vrot.lane.b32.xlu0 %v24, 32
    %v46 = vpop.permute.xlu0 %45
    %47 = vrot.lane.b32.xlu0 %v25, 32
    %v48 = vpop.permute.xlu0 %47
    %v51 = vsub.f32 %v24, %v46
    %v52 = vsub.f32 %v25, %v48
    %v53 = vand.u32 2147483647, %v51
    %v54 = vand.u32 2147483647, %v52
    %v55 = vsel %vm38, %v53, 0.0
    %56 = vadd.xlane.f32.xlu0 %v55
    %v57 = vpop.xlane.xlu0 %56
    %v58 = vsel %vm38, %v54, 0.0
    %59 = vadd.xlane.f32.xlu0 %v58
    %v60 = vpop.xlane.xlu0 %59
    %63 = vrot.lane.b32.xlu0 %v53, 64
    %v64 = vpop.permute.xlu0 %63
    %65 = vrot.lane.b32.xlu0 %v54, 64
    %v66 = vpop.permute.xlu0 %65
    %v69 = vsel %vm38, %v64, 0.0
    %70 = vadd.xlane.f32.xlu0 %v69
    %v71 = vpop.xlane.xlu0 %70
    %v72 = vsel %vm38, %v66, 0.0
    %73 = vadd.xlane.f32.xlu0 %v72
    %v74 = vpop.xlane.xlu0 %73
    %v75 = vadd.f32 %v41, 0.5
    %v76 = vadd.f32 %v44, 0.5
    %v77 = vsub.f32 %v75, %v57
    %v78 = vsub.f32 %v76, %v60
    %v79 = vmax.f32 %v77, 0.0
    %v80 = vmax.f32 %v78, 0.0
    %v81 = vsub.f32 %v75, %v71
    %v82 = vsub.f32 %v76, %v74
    %v83 = vmax.f32 %v81, 0.0
    %v84 = vmax.f32 %v82, 0.0
    %v85 = vadd.f32 %v79, %v83
    %v86 = vadd.f32 %v80, %v84
    %s87 = smul.u32 0, 16
    %v88 = vlaneseq
    %v89 = vshrl.u32 %v88, 7
    %v90 = vadd.s32 %v89, 8
    %v91 = vstv %s87
    %v92 = vadd.s32 %v91, %v89
    %v93 = vadd.s32 %v91, %v90
    %vm94 = vcmp.lt.s32.totalorder %v92, 16
    %vm95 = vcmp.lt.s32.totalorder %v93, 16
    %v96 = vsel %vm94, %v85, 0.0
    %v97 = vsel %vm95, %v86, 0.0
    %vm98 = vcmask 7168
    %99 = vst.msk [vmem:[%s1] sm:$0xff] %vm98, %v96
    %100 = vst.msk [vmem:[%s1 + $0x8] sm:$0xff] %vm98, %v97
    // Predicated region
    $region10: #{tpu_custom_call.1} parent=1 // pred_check
      _
    $region11: #{tpu_custom_call.1} parent=1 // pred_check_branch
      %102 = sbr.rel (0) target = $region13
    $region12: #{tpu_custom_call.1} parent=1 // pred_region
      _
    $region13: #{tpu_custom_call.1} parent=1 // pred_fallthru
      _
    // Predicated region
    $region14: #{tpu_custom_call.1} parent=1 // pred_check
      _
    $region15: #{tpu_custom_call.1} parent=1 // pred_check_branch
      %104 = sbr.rel (0) target = $region17
    $region16: #{tpu_custom_call.1} parent=1 // pred_region
      _
    $region17: #{tpu_custom_call.1} parent=1 // pred_fallthru
      _
    %105 = vsyncpa [#allocation3], 1

</llo_original>
